<compile_context>
chip_gen: v6e
topology: v6e:2x2x1
jax: 0.10.0
libtpu: 0.0.40
codegen_flags: <defaults>
</compile_context>

<pallas_src>
import functools

import jax
import jax.numpy as jnp
from jax.experimental import pallas as pl
from jax.experimental.pallas import tpu as pltpu


def _bce_kernel(p_ref, w_ref, y_ref, out_ref, vacc_ref, *, inv_n):
    step = pl.program_id(0)

    @pl.when(step == 0)
    def _init():
        vacc_ref[...] = jnp.zeros_like(vacc_ref)

    p = p_ref[...].astype(jnp.float32)          # (M, TN)
    w = w_ref[...].astype(jnp.float32)          # (M, TN)
    yv = y_ref[...]                             # (1, TN), f32

    # Ensemble convex combination: sublane reduction over M.
    p_bar = jnp.sum(w * p, axis=0, keepdims=True)                # (1, TN)

    # torch.nn.BCELoss with the -100 clamp applied to each log term
    # (clamp BEFORE the multiply so 0 * (-inf) never appears).
    log_p = jnp.maximum(jnp.log(p_bar), -100.0)
    log_1mp = jnp.maximum(jnp.log(1.0 - p_bar), -100.0)
    loss = -(yv * log_p + (1.0 - yv) * log_1mp)                  # (1, TN)

    vacc_ref[...] += loss

    @pl.when(step == pl.num_programs(0) - 1)
    def _finalize():
        out_ref[0, 0] = jnp.sum(vacc_ref[...]) * inv_n


def calibration_loss_binary(p_preds, weights_l, y, lambda_cal: float = 1.0,
                            tile_n: int = 65536):
    """Pallas implementation of CalibrationLossBinary.forward.

    p_preds:  (N, M, 2) ensemble member probabilities.
    weights_l:(N, M)    per-instance convex-combination weights.
    y:        (N,)      binary targets.
    lambda_cal is kept for API parity; it is unused in the reference forward.
    """
    del lambda_cal  # unused in the reference forward pass
    n, m = weights_l.shape

    # ---- HBM-side layout plumbing (slice class 1, put N on lanes) -----------
    p1 = jnp.transpose(p_preds[:, :, 1])            # (M, N) class-1 probs only
    wt = jnp.transpose(weights_l)                   # (M, N)
    yt = y.astype(jnp.float32).reshape(1, n)        # (1, N)

    # Lane tile: multiple of 128, capped so double-buffered inputs fit VMEM.
    itemsize = max(p1.dtype.itemsize, wt.dtype.itemsize)
    vmem_budget = 24 * 1024 * 1024
    max_tn = max(128, vmem_budget // (4 * max(m, 1) * itemsize))  # 2 arrays x 2 bufs
    tn = min(int(tile_n), n, max_tn)
    tn = max(128, ((tn + 127) // 128) * 128)
    n_pad = pl.cdiv(n, tn) * tn
    pad = n_pad - n
    if pad:
        # Padded columns contribute exactly 0 loss:
        #   weights 0 -> p_bar = 0; y = 0 -> loss = -log(1 - 0) = 0.
        p1 = jnp.pad(p1, ((0, 0), (0, pad)), constant_values=0.5)
        wt = jnp.pad(wt, ((0, 0), (0, pad)), constant_values=0.0)
        yt = jnp.pad(yt, ((0, 0), (0, pad)), constant_values=0.0)

    grid = (n_pad // tn,)
    inv_n = 1.0 / float(n)

    bytes_accessed = int(p1.size * p1.dtype.itemsize
                         + wt.size * wt.dtype.itemsize
                         + yt.size * yt.dtype.itemsize + 4)

    out = pl.pallas_call(
        functools.partial(_bce_kernel, inv_n=inv_n),
        out_shape=jax.ShapeDtypeStruct((1, 1), jnp.float32),
        grid_spec=pltpu.PrefetchScalarGridSpec(
            num_scalar_prefetch=0,
            grid=grid,
            in_specs=[
                pl.BlockSpec((m, tn), lambda i: (0, i)),   # p1  (M, TN)
                pl.BlockSpec((m, tn), lambda i: (0, i)),   # w   (M, TN)
                pl.BlockSpec((1, tn), lambda i: (0, i)),   # y   (1, TN)
            ],
            out_specs=pl.BlockSpec(memory_space=pltpu.MemorySpace.SMEM),
            scratch_shapes=[pltpu.VMEM((1, tn), jnp.float32)],
        ),
        compiler_params=pltpu.CompilerParams(
            # N axis is a reduction into a resident accumulator -> "arbitrary".
            dimension_semantics=("arbitrary",),
        ),
        cost_estimate=pl.CostEstimate(
            flops=int(3 * n * m + 8 * n),
            transcendentals=int(2 * n),
            bytes_accessed=bytes_accessed,
        ),
    )(p1, wt, yt)
    return out[0, 0]


def _reference(p_preds, weights_l, y):
    p_bar = jnp.sum(weights_l[:, :, None] * p_preds, axis=1)
    p1 = p_bar[:, 1]
    yf = y.astype(jnp.float32)
    log_p = jnp.maximum(jnp.log(p1), -100.0)
    log_1mp = jnp.maximum(jnp.log(1.0 - p1), -100.0)
    return jnp.mean(-(yf * log_p + (1.0 - yf) * log_1mp))


if __name__ == "__main__":
    key = jax.random.PRNGKey(0)
    k1, k2, k3 = jax.random.split(key, 3)

    # Small demo shapes: N instances, M ensemble members, K=2 classes (binary).
    # N deliberately not a multiple of 128 and M != 8 to exercise padding and
    # the general sublane reduction; tile_n=128 forces a multi-step grid so
    # the init / accumulate / finalize path is covered.
    N, M = 200, 6

    p1 = jax.random.uniform(k1, (N, M), minval=0.05, maxval=0.95)
    p_preds = jnp.stack([1.0 - p1, p1], axis=-1)                          # (N, M, 2)
    weights_l = jax.nn.softmax(jax.random.normal(k2, (N, M)), axis=-1)    # (N, M)
    y = jax.random.bernoulli(k3, 0.5, (N,)).astype(jnp.float32)           # (N,)

    loss = calibration_loss_binary(p_preds, weights_l, y, tile_n=128)
    loss = jax.block_until_ready(loss)

    ref = _reference(p_preds, weights_l, y)
    assert jnp.allclose(loss, ref, rtol=1e-5, atol=1e-6), (loss, ref)

    print("KERNEL_OK")
</pallas_src>

<mosaic_0001>
module attributes {stable_mosaic.version = 11 : i64} {
  func.func @_bce_kernel(%arg0: i32, %arg1: memref<6x128xf32, #tpu.memory_space<vmem>>, %arg2: memref<6x128xf32, #tpu.memory_space<vmem>>, %arg3: memref<1x128xf32, #tpu.memory_space<vmem>>, %arg4: memref<1x1xf32, #tpu.memory_space<smem>>, %arg5: memref<1x128xf32, #tpu.memory_space<vmem>>) attributes {dimension_semantics = [#tpu.dimension_semantics<arbitrary>], iteration_bounds = array<i64: 2>, scalar_prefetch = 0 : i64, scratch_operands = 1 : i64, tpu.core_type = #tpu.core_type<tc>, window_params = [{transform_indices = @transform_0, window_bounds = array<i64: 6, 128>}, {transform_indices = @transform_1, window_bounds = array<i64: 6, 128>}, {transform_indices = @transform_2, window_bounds = array<i64: 1, 128>}, {transform_indices = @transform_3, window_bounds = array<i64: 1, 1>}]} {
    %c0_i32 = arith.constant 0 : i32
    %0 = arith.cmpi eq, %arg0, %c0_i32 : i32
    %1 = arith.extui %0 : i1 to i32
    %c0_i32_0 = arith.constant 0 : i32
    %2 = arith.cmpi ne, %1, %c0_i32_0 : i32
    scf.if %2 {
      %cst_16 = arith.constant 0.000000e+00 : f32
      %30 = vector.broadcast %cst_16 : f32 to vector<1x128xf32>
      %c0_17 = arith.constant 0 : index
      %c0_18 = arith.constant 0 : index
      %31 = vector.load %arg5[%c0_17, %c0_18] : memref<1x128xf32, #tpu.memory_space<vmem>>, vector<1x128xf32>
      tpu.vector_store %arg5[%c0_17, %c0_18], %30 {strides = array<i32>} : memref<1x128xf32, #tpu.memory_space<vmem>>, vector<1x128xf32>,
    } else {
    }
    %c0 = arith.constant 0 : index
    %c0_1 = arith.constant 0 : index
    %3 = vector.load %arg1[%c0, %c0_1] : memref<6x128xf32, #tpu.memory_space<vmem>>, vector<6x128xf32>
    %c0_2 = arith.constant 0 : index
    %c0_3 = arith.constant 0 : index
    %4 = vector.load %arg2[%c0_2, %c0_3] : memref<6x128xf32, #tpu.memory_space<vmem>>, vector<6x128xf32>
    %c0_4 = arith.constant 0 : index
    %c0_5 = arith.constant 0 : index
    %5 = vector.load %arg3[%c0_4, %c0_5] : memref<1x128xf32, #tpu.memory_space<vmem>>, vector<1x128xf32>
    %6 = arith.mulf %4, %3 : vector<6x128xf32>
    %cst = arith.constant dense<0.000000e+00> : vector<128xf32>
    %7 = vector.multi_reduction <add>, %6, %cst [0] : vector<6x128xf32> to vector<128xf32>
    %8 = vector.shape_cast %7 : vector<128xf32> to vector<1x128xf32>
    %9 = math.log %8 : vector<1x128xf32>
    %cst_6 = arith.constant -1.000000e+02 : f32
    %10 = vector.broadcast %cst_6 : f32 to vector<1x128xf32>
    %11 = arith.maximumf %9, %10 : vector<1x128xf32>
    %cst_7 = arith.constant 1.000000e+00 : f32
    %12 = vector.broadcast %cst_7 : f32 to vector<1x128xf32>
    %13 = arith.subf %12, %8 : vector<1x128xf32>
    %14 = math.log %13 : vector<1x128xf32>
    %cst_8 = arith.constant -1.000000e+02 : f32
    %15 = vector.broadcast %cst_8 : f32 to vector<1x128xf32>
    %16 = arith.maximumf %14, %15 : vector<1x128xf32>
    %17 = arith.mulf %5, %11 : vector<1x128xf32>
    %cst_9 = arith.constant 1.000000e+00 : f32
    %18 = vector.broadcast %cst_9 : f32 to vector<1x128xf32>
    %19 = arith.subf %18, %5 : vector<1x128xf32>
    %20 = arith.mulf %19, %16 : vector<1x128xf32>
    %21 = arith.addf %17, %20 : vector<1x128xf32>
    %cst_10 = arith.constant 0.000000e+00 : f32
    %22 = vector.broadcast %cst_10 : f32 to vector<1x128xf32>
    %23 = arith.subf %22, %21 : vector<1x128xf32>
    %c0_11 = arith.constant 0 : index
    %c0_12 = arith.constant 0 : index
    %24 = vector.load %arg5[%c0_11, %c0_12] : memref<1x128xf32, #tpu.memory_space<vmem>>, vector<1x128xf32>
    %25 = arith.addf %24, %23 : vector<1x128xf32>
    %c0_13 = arith.constant 0 : index
    %c0_14 = arith.constant 0 : index
    %26 = vector.load %arg5[%c0_13, %c0_14] : memref<1x128xf32, #tpu.memory_space<vmem>>, vector<1x128xf32>
    tpu.vector_store %arg5[%c0_13, %c0_14], %25 {strides = array<i32>} : memref<1x128xf32, #tpu.memory_space<vmem>>, vector<1x128xf32>,
    %c1_i32 = arith.constant 1 : i32
    %27 = arith.cmpi eq, %arg0, %c1_i32 : i32
    %28 = arith.extui %27 : i1 to i32
    %c0_i32_15 = arith.constant 0 : i32
    %29 = arith.cmpi ne, %28, %c0_i32_15 : i32
    scf.if %29 {
      %c0_16 = arith.constant 0 : index
      %c0_17 = arith.constant 0 : index
      %30 = vector.load %arg5[%c0_16, %c0_17] : memref<1x128xf32, #tpu.memory_space<vmem>>, vector<1x128xf32>
      %31 = vector.shape_cast %30 : vector<1x128xf32> to vector<1x1x128xf32>
      %cst_18 = arith.constant dense<0.000000e+00> : vector<1xf32>
      %32 = vector.multi_reduction <add>, %31, %cst_18 [1, 2] : vector<1x1x128xf32> to vector<1xf32>
      %33 = vector.shape_cast %32 : vector<1xf32> to vector<1x1x1xf32>
      %34 = vector.extract %33[0, 0, 0] : f32 from vector<1x1x1xf32>
      %cst_19 = arith.constant 5.000000e-03 : f32
      %35 = arith.mulf %34, %cst_19 : f32
      %c0_20 = arith.constant 0 : index
      %c0_21 = arith.constant 0 : index
      %36 = memref.load %arg4[%c0_20, %c0_21] : memref<1x1xf32, #tpu.memory_space<smem>>
      memref.store %35, %arg4[%c0_20, %c0_21] : memref<1x1xf32, #tpu.memory_space<smem>>
    } else {
    }
    return
  }
  func.func @transform_0(%arg0: i32) -> (i32, i32) {
    %c0_i32 = arith.constant 0 : i32
    %c0_i32_0 = arith.constant 0 : i32
    return %c0_i32, %arg0 : i32, i32
  }
  func.func @transform_1(%arg0: i32) -> (i32, i32) {
    %c0_i32 = arith.constant 0 : i32
    %c0_i32_0 = arith.constant 0 : i32
    return %c0_i32, %arg0 : i32, i32
  }
  func.func @transform_2(%arg0: i32) -> (i32, i32) {
    %c0_i32 = arith.constant 0 : i32
    %c0_i32_0 = arith.constant 0 : i32
    return %c0_i32, %arg0 : i32, i32
  }
  func.func @transform_3(%arg0: i32) -> (i32, i32) {
    %c0_i32 = arith.constant 0 : i32
    %c0_i32_0 = arith.constant 0 : i32
    %c0_i32_1 = arith.constant 0 : i32
    return %c0_i32, %c0_i32_0 : i32, i32
  }
}

</mosaic_0001>

<llo_original>
// kernel: tpu_custom_call.1
$region0: #{tpu_custom_call.1}
  #allocation0 [shape = 'u32[]', space=smem, size = 0x4, offset = 0x4, fixed_abs, tag = 'smem constant byte address 0x4 - core index']
  #allocation1 [shape = 'u32[144,128]{1,0:T(1,128)}', space=vmem, size = 0x12000, scoped, tag = 'internal scratch']
  #allocation2 [shape = 'f32[1,128]{1,0:T(1,128)}', space=vmem, size = 0x200, scoped, tag = 'scratch operand']
  %s0 = inlined_call_operand.hbm [shape: f32[6,256], index: 0, kind: input, shape index: {}]
  %s1 = inlined_call_operand.hbm [shape: f32[6,256], index: 1, kind: input, shape index: {}]
  %s2 = inlined_call_operand.vmem [shape: f32[1,256], index: 2, kind: input, shape index: {}]
  %s3 = inlined_call_operand.hbm [shape: f32[1,1], index: 3, kind: output, shape index: {}]
  %s4 = sld [smem:[#allocation0]]
  $region61: #{tpu_custom_call.1} parent=0
    _
  %s6 = ssub.s32 1, %s4
  %s7 = scalar_select 0, %s6, %s4
  $region1: #{tpu_custom_call.1} parent=0
    #allocation3 [shape = 'u8[8192]{0}', space=vmem, size = 0x2000, scoped, tag = 'input window, operand 0']
    #allocation4 [shape = 's32[2]{0}', space=sflag, size = 0x8, scoped, tag = 'scoped memory for tpu_custom_call.1']
    #allocation5 [shape = 's32[2]{0}', space=sflag, size = 0x8, scoped, tag = 'scoped memory for tpu_custom_call.1']
    #allocation6 [shape = 'u8[8192]{0}', space=vmem, size = 0x2000, scoped, tag = 'input window, operand 1']
    #allocation7 [shape = 's32[2]{0}', space=sflag, size = 0x8, scoped, tag = 'scoped memory for tpu_custom_call.1']
    #allocation8 [shape = 'u8[512]{0}', space=smem, size = 0x200, scoped, tag = 'output window, operand 0, single buffered']
    %8 = vsyncpa [#allocation4], 0
    %s9 = scalar_lea.sflag [#allocation4], 1
    %10 = vsyncpa %s9, 0
    %11 = vsyncpa [#allocation7], 0
    %s12 = scalar_lea.sflag [#allocation7], 1
    %13 = vsyncpa %s12, 0
    %14 = vsyncpa [#allocation5], 0
    loop: start=0, step=1, limit=4
    $region2: #{tpu_custom_call.1} parent=1 // loop_pre_header
      _
    $region3: #{tpu_custom_call.1} parent=1 // loop_header
      %s16 = sphi 0, %s20
      %p17 = scmp.ge.s32.totalorder %s16, 4
      %s26 = sphi 0, %s28
      %s29 = sphi 0, %s26
      %s30 = sphi 0, %s29
      %s46 = sphi 0, %s30
      %s52 = sphi 0, %s54
      %s55 = sphi 0, %s52
      %s56 = sphi 0, %s55
      %s72 = sphi 0, %s56
      %s78 = sphi 0, %s80
      %s81 = sphi 0, %s78
      %s82 = sphi 0, %s81
      %s98 = sphi 0, %s82
      %s102 = sphi 0, %s102
      %s104 = sphi 0, %s102
      %s105 = sphi 0, %s104
      %s119 = sphi 0, %s105
    $region4: #{tpu_custom_call.1} parent=1 // loop_header_branch
      %19 = sbr.rel (%p17) target = $region8
    $region5: #{tpu_custom_call.1} parent=1 // loop_body
      %s21 = ssub.s32 %s16, 1
      %s22 = ssub.s32 %s16, 2
      %s23 = sadd.s32 %s16, 1
      %s24 = ssub.s32 %s16, %s23
      %p25 = scmp.eq.s32.totalorder %s24, 0
      %s27 = sadd.s32 %s26, 1
      %s28 = scalar_select %p25, %s26, %s27
      %p31 = pneg %p25
      %p32 = scmp.eq.s32.totalorder %s16, 1
      %p33 = por %p31, %p32
      %p34 = scmp.ne.s32.totalorder %s26, %s29
      %p35 = scmp.eq.s32.totalorder %s16, 0
      %p36 = por %p34, %p35
      %p37 = scmp.ne.s32.totalorder %s26, %s29
      %p38 = scmp.eq.s32.totalorder %s21, 1
      %p39 = por %p37, %p38
      %p40 = scmp.ne.s32.totalorder %s29, %s30
      %p41 = scmp.eq.s32.totalorder %s21, 0
      %p42 = por %p40, %p41
      %p43 = scmp.ne.s32.totalorder %s29, %s30
      %p44 = scmp.eq.s32.totalorder %s22, 1
      %p45 = por %p43, %p44
      %p47 = scmp.ne.s32.totalorder %s30, %s46
      %p48 = scmp.eq.s32.totalorder %s22, 0
      %p49 = por %p47, %p48
      %s50 = ssub.s32 %s16, %s23
      %p51 = scmp.eq.s32.totalorder %s50, 0
      %s53 = sadd.s32 %s52, 1
      %s54 = scalar_select %p51, %s52, %s53
      %p57 = pneg %p51
      %p58 = scmp.eq.s32.totalorder %s16, 1
      %p59 = por %p57, %p58
      %p60 = scmp.ne.s32.totalorder %s52, %s55
      %p61 = scmp.eq.s32.totalorder %s16, 0
      %p62 = por %p60, %p61
      %p63 = scmp.ne.s32.totalorder %s52, %s55
      %p64 = scmp.eq.s32.totalorder %s21, 1
      %p65 = por %p63, %p64
      %p66 = scmp.ne.s32.totalorder %s55, %s56
      %p67 = scmp.eq.s32.totalorder %s21, 0
      %p68 = por %p66, %p67
      %p69 = scmp.ne.s32.totalorder %s55, %s56
      %p70 = scmp.eq.s32.totalorder %s22, 1
      %p71 = por %p69, %p70
      %p73 = scmp.ne.s32.totalorder %s56, %s72
      %p74 = scmp.eq.s32.totalorder %s22, 0
      %p75 = por %p73, %p74
      %s76 = ssub.s32 %s16, %s23
      %p77 = scmp.eq.s32.totalorder %s76, 0
      %s79 = sadd.s32 %s78, 1
      %s80 = scalar_select %p77, %s78, %s79
      %p83 = pneg %p77
      %p84 = scmp.eq.s32.totalorder %s16, 1
      %p85 = por %p83, %p84
      %p86 = scmp.ne.s32.totalorder %s78, %s81
      %p87 = scmp.eq.s32.totalorder %s16, 0
      %p88 = por %p86, %p87
      %p89 = scmp.ne.s32.totalorder %s78, %s81
      %p90 = scmp.eq.s32.totalorder %s21, 1
      %p91 = por %p89, %p90
      %p92 = scmp.ne.s32.totalorder %s81, %s82
      %p93 = scmp.eq.s32.totalorder %s21, 0
      %p94 = por %p92, %p93
      %p95 = scmp.ne.s32.totalorder %s81, %s82
      %p96 = scmp.eq.s32.totalorder %s22, 1
      %p97 = por %p95, %p96
      %p99 = scmp.ne.s32.totalorder %s82, %s98
      %p100 = scmp.eq.s32.totalorder %s22, 0
      %p101 = por %p99, %p100
      %s103 = sadd.s32 %s102, 1
      %p106 = scmp.eq.s32.totalorder %s16, 1
      %p107 = scmp.ne.s32.totalorder %s102, %s104
      %p108 = scmp.eq.s32.totalorder %s16, 0
      %p109 = por %p107, %p108
      %p110 = scmp.ne.s32.totalorder %s102, %s104
      %p111 = scmp.eq.s32.totalorder %s21, 1
      %p112 = por %p110, %p111
      %p113 = scmp.ne.s32.totalorder %s104, %s105
      %p114 = scmp.eq.s32.totalorder %s21, 0
      %p115 = por %p113, %p114
      %p116 = scmp.ne.s32.totalorder %s104, %s105
      %p117 = scmp.eq.s32.totalorder %s22, 1
      %p118 = por %p116, %p117
      %p120 = scmp.ne.s32.totalorder %s105, %s119
      %p121 = scmp.eq.s32.totalorder %s22, 0
      %p122 = por %p120, %p121
      %p123 = scmp.le.s32.totalorder 1, %s16
      %p124 = scmp.lt.s32.totalorder %s16, 3
      %p125 = pnand %p123, %p124
      %p126 = pneg %p125
      // Predicated region
      $region9: #{tpu_custom_call.1} parent=5 // pred_check
        _
      $region10: #{tpu_custom_call.1} parent=5 // pred_check_branch
        %128 = sbr.rel (%p125) target = $region12
      $region11: #{tpu_custom_call.1} parent=5 // pred_region
        %s129 = ssub.s32 %s16, 1
      $region12: #{tpu_custom_call.1} parent=5 // pred_fallthru
        _
      %p130 = scmp.lt.s32.totalorder %s16, 2
      // Predicated region
      $region13: #{tpu_custom_call.1} parent=5 // pred_check
        %p131 = pneg %p130
      $region14: #{tpu_custom_call.1} parent=5 // pred_check_branch
        %133 = sbr.rel (%p131) target = $region16
      $region15: #{tpu_custom_call.1} parent=5 // pred_region
        // Predicated region
        $region17: #{tpu_custom_call.1} parent=15 // pred_check
          %p134 = pneg %p36
        $region18: #{tpu_custom_call.1} parent=15 // pred_check_branch
          %136 = sbr.rel (%p134) target = $region20
        $region19: #{tpu_custom_call.1} parent=15 // pred_region
          %s137 = sand.u32 %s26, 1
          %s138 = scalar_lea.sflag [#allocation4], %s137
          %s139 = sand.u32 %s26, 1
          %s140 = smul.addr %s139, 8
          %s141 = scalar_lea.vmem [#allocation3], %s140
          %s143 = ssub.s32 128, 128
          %144 = vsyncadd %s138, %s143
          %s145 = smul.addr %s16, 128
          %s146 = scalar_lea.hbm %s0, %s145
          %s148 = sshll.u32 %s141, 4
          %s149 = int_to_ptr.vmem [resolvable:$true] %s148
          %151 = dma.hbm_to_vmem [thread:$0]  %s146, 128, %s149, %s138
        $region20: #{tpu_custom_call.1} parent=15 // pred_fallthru
          _
        // Predicated region
        $region21: #{tpu_custom_call.1} parent=15 // pred_check
          %p152 = pneg %p62
        $region22: #{tpu_custom_call.1} parent=15 // pred_check_branch
          %154 = sbr.rel (%p152) target = $region24
        $region23: #{tpu_custom_call.1} parent=15 // pred_region
          %s155 = sand.u32 %s52, 1
          %s156 = scalar_lea.sflag [#allocation7], %s155
          %s157 = sand.u32 %s52, 1
          %s158 = smul.addr %s157, 8
          %s159 = scalar_lea.vmem [#allocation6], %s158
          %s161 = ssub.s32 128, 128
          %162 = vsyncadd %s156, %s161
          %s163 = smul.addr %s16, 128
          %s164 = scalar_lea.hbm %s1, %s163
          %s166 = sshll.u32 %s159, 4
          %s167 = int_to_ptr.vmem [resolvable:$true] %s166
          %169 = dma.hbm_to_vmem [thread:$0]  %s164, 128, %s167, %s156
        $region24: #{tpu_custom_call.1} parent=15 // pred_fallthru
          _
        // Predicated region
        $region25: #{tpu_custom_call.1} parent=15 // pred_check
          %p170 = pneg %p88
        $region26: #{tpu_custom_call.1} parent=15 // pred_check_branch
          %172 = sbr.rel (%p170) target = $region28
        $region27: #{tpu_custom_call.1} parent=15 // pred_region
          %p173 = scmp.lt.s32.totalorder %s16, 1
          %s174 = scalar_select %p173, %s16, 1
          %s175 = scalar_lea.vmem %s2, %s174
        $region28: #{tpu_custom_call.1} parent=15 // pred_fallthru
          _
      $region16: #{tpu_custom_call.1} parent=5 // pred_fallthru
        _
      %p176 = scmp.le.s32.totalorder 1, %s16
      %p177 = scmp.lt.s32.totalorder %s16, 3
      %p178 = pnand %p176, %p177
      %p179 = pneg %p178
      // Predicated region
      $region29: #{tpu_custom_call.1} parent=5 // pred_check
        _
      $region30: #{tpu_custom_call.1} parent=5 // pred_check_branch
        %181 = sbr.rel (%p178) target = $region32
      $region31: #{tpu_custom_call.1} parent=5 // pred_region
        %s182 = ssub.s32 %s16, 1
        %s183 = sand.u32 %s29, 1
        %s184 = scalar_lea.sflag [#allocation4], %s183
        %s185 = sand.u32 %s29, 1
        %s186 = smul.addr %s185, 8
        %s187 = scalar_lea.vmem [#allocation3], %s186
        // Predicated region
        $region33: #{tpu_custom_call.1} parent=31 // pred_check
          %p188 = pneg %p42
        $region34: #{tpu_custom_call.1} parent=31 // pred_check_branch
          %190 = sbr.rel (%p188) target = $region36
        $region35: #{tpu_custom_call.1} parent=31 // pred_region
          %191 = dma.done %s184, 128
        $region36: #{tpu_custom_call.1} parent=31 // pred_fallthru
          _
        %s192 = sand.u32 %s55, 1
        %s193 = scalar_lea.sflag [#allocation7], %s192
        %s194 = sand.u32 %s55, 1
        %s195 = smul.addr %s194, 8
        %s196 = scalar_lea.vmem [#allocation6], %s195
        // Predicated region
        $region37: #{tpu_custom_call.1} parent=31 // pred_check
          %p197 = pneg %p68
        $region38: #{tpu_custom_call.1} parent=31 // pred_check_branch
          %199 = sbr.rel (%p197) target = $region40
        $region39: #{tpu_custom_call.1} parent=31 // pred_region
          %200 = dma.done %s193, 128
        $region40: #{tpu_custom_call.1} parent=31 // pred_fallthru
          _
        %s201 = sand.u32 %s29, 1
        %s202 = scalar_lea.sflag [#allocation4], %s201
        %s203 = sand.u32 %s29, 1
        %s204 = smul.addr %s203, 8
        %s205 = scalar_lea.vmem [#allocation3], %s204
        %p206 = pneg %p42
        %p207 = pneg %p39
        %s208 = sand.u32 %s55, 1
        %s209 = scalar_lea.sflag [#allocation7], %s208
        %s210 = sand.u32 %s55, 1
        %s211 = smul.addr %s210, 8
        %s212 = scalar_lea.vmem [#allocation6], %s211
        %p213 = pneg %p68
        %p214 = pneg %p65
        %p215 = scmp.lt.s32.totalorder %s21, 1
        %s216 = scalar_select %p215, %s21, 1
        %s217 = scalar_lea.vmem %s2, %s216
        %p218 = pneg %p94
        %p219 = pneg %p91
        %p220 = pneg %p115
        %p221 = pneg %p112
        %p222 = scmp.lt.s32.totalorder %s21, 1
        %s223 = scalar_select %p222, %s21, 1
        %s224 = scalar_lea.vmem %s2, %s223
        %p225 = scmp.eq.s32.totalorder %s21, 0
        // Predicated region
        $region41: #{tpu_custom_call.1} parent=31 // pred_check
          %p226 = pneg %p225
        $region42: #{tpu_custom_call.1} parent=31 // pred_check_branch
          %228 = sbr.rel (%p226) target = $region44
        $region43: #{tpu_custom_call.1} parent=31 // pred_region
          %229 = vst [vmem:[#allocation2] sm:$0x1] 0.0
        $region44: #{tpu_custom_call.1} parent=31 // pred_fallthru
          _
        %v230 = vld [vmem:[%s187] sm:$0x3f]
        %v231 = vld [vmem:[%s196] sm:$0x3f]
        %v232 = vld [vmem:[%s224] sm:$0x1]
        %v233 = vmul.f32 %v231, %v230
        %vm234 = vcmask 1045504
        %v235 = vsel %vm234, %v233, 0.0
        %v236 = vrot.slane %v235, 4
        %v237 = vadd.f32 %v235, %v236
        %v238 = vrot.slane %v237, 2
        %v239 = vadd.f32 %v237, %v238
        %v240 = vrot.slane %v239, 1
        %v241 = vadd.f32 %v239, %v240
        %v242 = vlog2.pop %v241
        %v243 = vmul.f32 %v242, 0.6931472
        %v244 = vmax.f32 %v243, -100.0
        %v245 = vsub.f32 1.0, %v241
        %v246 = vlog2.pop %v245
        %v247 = vmul.f32 %v246, 0.6931472
        %v248 = vmax.f32 %v247, -100.0
        %v249 = vmul.f32 %v232, %v244
        %v250 = vsub.f32 1.0, %v232
        %v251 = vmul.f32 %v250, %v248
        %v252 = vadd.f32 %v249, %v251
        %v253 = vsub.f32 0.0, %v252
        %v254 = vld [vmem:[#allocation2] sm:$0x1]
        %v255 = vadd.f32 %v254, %v253
        %256 = vst [vmem:[#allocation2] sm:$0x1] %v255
        %p257 = scmp.eq.s32.totalorder %s21, 1
        // Predicated region
        $region45: #{tpu_custom_call.1} parent=31 // pred_check
          %p258 = pneg %p257
        $region46: #{tpu_custom_call.1} parent=31 // pred_check_branch
          %260 = sbr.rel (%p258) target = $region48
        $region47: #{tpu_custom_call.1} parent=31 // pred_region
          %v261 = vld [vmem:[#allocation2] sm:$0x1]
          %vm262 = vcmask 1040384
          %v263 = vsel %vm262, %v261, 0.0
          %264 = vadd.xlane.f32.xlu0 %v263
          %v265 = vpop.xlane.xlu0 %264
          %v266 = vrot.slane %v265, 4
          %v267 = vadd.f32 %v265, %v266
          %v268 = vrot.slane %v267, 2
          %v269 = vadd.f32 %v267, %v268
          %v270 = vrot.slane %v269, 1
          %v271 = vadd.f32 %v269, %v270
          %s272 = vtos %v271
          %s273 = smul.f32 %s272, 0.005
          %s274 = scalar_lea.smem [#allocation8], 0
          %275 = sst [smem:[%s274]] %s273
        $region48: #{tpu_custom_call.1} parent=31 // pred_fallthru
          _
        // Predicated region
        $region49: #{tpu_custom_call.1} parent=31 // pred_check
          %p276 = pneg %p112
        $region50: #{tpu_custom_call.1} parent=31 // pred_check_branch
          %278 = sbr.rel (%p276) target = $region52
        $region51: #{tpu_custom_call.1} parent=31 // pred_region
          %s280 = ssub.s32 16, 16
          %281 = vsyncadd [#allocation5], %s280
          %284 = dma.smem_to_hbm [#allocation8], 16, %s3, [#allocation5]
        $region52: #{tpu_custom_call.1} parent=31 // pred_fallthru
          _
        // Predicated region
        $region53: #{tpu_custom_call.1} parent=31 // pred_check
          %p285 = pneg %p112
        $region54: #{tpu_custom_call.1} parent=31 // pred_check_branch
          %287 = sbr.rel (%p285) target = $region56
        $region55: #{tpu_custom_call.1} parent=31 // pred_region
          %288 = dma.done [#allocation5], 16
        $region56: #{tpu_custom_call.1} parent=31 // pred_fallthru
          _
        %289 = sfence
      $region32: #{tpu_custom_call.1} parent=5 // pred_fallthru
        _
      %p290 = scmp.le.s32.totalorder 2, %s16
      // Predicated region
      $region57: #{tpu_custom_call.1} parent=5 // pred_check
        %p291 = pneg %p290
      $region58: #{tpu_custom_call.1} parent=5 // pred_check_branch
        %293 = sbr.rel (%p291) target = $region60
      $region59: #{tpu_custom_call.1} parent=5 // pred_region
        %s294 = ssub.s32 %s16, 2
      $region60: #{tpu_custom_call.1} parent=5 // pred_fallthru
        _
    $region6: #{tpu_custom_call.1} parent=1 // loop_footer
      %s20 = sadd.s32 1, %s16
    $region7: #{tpu_custom_call.1} parent=1 // loop_footer_branch
      %15 = sbr.rel target = $region3
    $region8: #{tpu_custom_call.1} parent=1 // loop_exit
      _
    %295 = vsyncpa [#allocation4], 1
    %s296 = scalar_lea.sflag [#allocation4], 1
    %297 = vsyncpa %s296, 1
    %298 = vsyncpa [#allocation7], 1
    %s299 = scalar_lea.sflag [#allocation7], 1
    %300 = vsyncpa %s299, 1
    %301 = vsyncpa [#allocation5], 1
    %s302 = scalar_lea.sflag [#allocation5], 1
    %303 = vsyncpa %s302, 1

</llo_original>
